<compile_context>
chip_gen: v7x
topology: tpu7x:2x2x1
jax: 0.10.0
libtpu: 0.0.40
codegen_flags: <defaults>
</compile_context>

<pallas_src>
import functools

import jax
import jax.numpy as jnp
from jax.experimental import pallas as pl
from jax.experimental.pallas import tpu as pltpu

_LANES = 128


def _round_up(x, m):
    return ((x + m - 1) // m) * m


def _stats_kernel(x_ref, mean_ref, var_ref, count_ref,
                  new_mean_ref, new_var_ref, new_count_ref,
                  sum_acc, sumsq_acc, *, n_valid, full_reduce):
    """Pass 1: accumulate shifted sum / sumsq, then Welford-merge with running stats."""

    @pl.when(pl.program_id(0) == 0)
    def _init():
        sum_acc[...] = jnp.zeros_like(sum_acc)
        sumsq_acc[...] = jnp.zeros_like(sumsq_acc)

    # One-pass moments, shifted by the running mean: keeps cancellation in check and
    # makes the (running-mean valued) padding contribute exactly zero.
    t = x_ref[...] - mean_ref[...]
    sum_acc[...] += jnp.sum(t, axis=0, keepdims=True)
    sumsq_acc[...] += jnp.sum(t * t, axis=0, keepdims=True)

    @pl.when(pl.program_id(0) == pl.num_programs(0) - 1)
    def _finalize():
        n = jnp.float32(n_valid)
        s = sum_acc[...]
        ss = sumsq_acc[...]
        if full_reduce:
            # reward_dim == 1 lane-dense layout: statistics run over every element of
            # the slab, so collapse the per-lane partials as well.
            s = jnp.full_like(s, jnp.sum(s))
            ss = jnp.full_like(ss, jnp.sum(ss))

        mean = mean_ref[...]
        var = var_ref[...]
        count = count_ref[0, 0]

        # Batch moments (torch.var default = unbiased, divide by N - 1).
        # NOTE: N == 1 yields NaN variance, matching torch.var(unbiased=True).
        batch_mean = mean + s / n
        batch_var = (ss - s * s / n) / (n - 1.0)

        # RunningMeanStd.update_from_moments (Welford merge).
        delta = batch_mean - mean
        tot = count + n
        new_mean_ref[...] = mean + delta * (n / tot)
        m2 = var * count + batch_var * n + (delta * delta) * (count * n / tot)
        new_var_ref[...] = m2 / tot
        new_count_ref[0, 0] = tot


def _normalize_kernel(x_ref, mean_ref, var_ref, out_ref, *, epsilon):
    """Pass 2: out = clip((x - new_mean) * rsqrt(new_var + eps), -5, 5)."""
    inv_std = jax.lax.rsqrt(var_ref[...] + epsilon)          # (1, L) -> hoisted, EUP
    out_ref[...] = jnp.clip((x_ref[...] - mean_ref[...]) * inv_std, -5.0, 5.0)


@functools.partial(jax.jit, static_argnames=("epsilon", "block_rows"))
def return_normalizer_forward(returns, mean, var, count, *, epsilon=1e-8,
                              block_rows=512):
    """Runs one forward() of ReturnNormalizer.

    Args:
      returns: (N, D) float32 batch of returns.
      mean, var: (D,) float32 running statistics.
      count: (1,) float32 running count.
    Returns:
      (normalized_returns (N, D), new_mean (D,), new_var (D,), new_count (1,))
    """
    if returns.ndim != 2:
        raise ValueError("returns must be 2-D (batch, reward_dim)")
    returns = returns.astype(jnp.float32)
    mean = mean.astype(jnp.float32)
    var = var.astype(jnp.float32)
    count = count.astype(jnp.float32)
    n, d = returns.shape

    if d == 1:
        # Lane-dense layout: fold the batch onto (sublane, lane) so all 128 lanes are
        # active and stores are unmasked.  Pad with the running mean (shift value).
        rows_needed = pl.cdiv(n, _LANES)
        block_r = min(block_rows, _round_up(rows_needed, 8))
        rows_total = _round_up(rows_needed, block_r)
        n_pad = rows_total * _LANES
        pad = n_pad - n
        x_flat = returns.reshape(n)
        if pad:
            x_flat = jnp.concatenate(
                [x_flat, jnp.full((pad,), mean[0], jnp.float32)])
        x2d = x_flat.reshape(rows_total, _LANES)
        mean_v = jnp.broadcast_to(mean.reshape(1, 1), (1, _LANES))
        var_v = jnp.broadcast_to(var.reshape(1, 1), (1, _LANES))
        width = _LANES
        full_reduce = True
        fresh_input = True            # x2d is always a freshly materialized slab
    else:
        # Generic fallback: reward_dim stays on the lane axis, batch axis is tiled.
        # TODO(synk): for small D > 1 the lane axis is underfilled; a fully lane-dense
        # layout would need per-column strided reductions.
        block_r = min(_round_up(n, 8),
                      _round_up(max(1, (block_rows * _LANES) // d), 8))
        rows_total = _round_up(n, block_r)
        pad = rows_total - n
        x2d = returns
        if pad:
            x2d = jnp.concatenate(
                [x2d, jnp.broadcast_to(mean.reshape(1, d), (pad, d))], axis=0)
        mean_v = mean.reshape(1, d)
        var_v = var.reshape(1, d)
        width = d
        full_reduce = False
        fresh_input = pad > 0

    count_s = count.reshape(1, 1)
    num_tiles = rows_total // block_r

    x_spec = pl.BlockSpec((block_r, width), lambda i: (i, 0))
    vec_spec = pl.BlockSpec((1, width), lambda i: (0, 0))                 # resident stats
    smem_spec = pl.BlockSpec(memory_space=pltpu.MemorySpace.SMEM)         # scalar count

    # ---- Pass 1: batch moments + Welford merge with the running statistics ----
    new_mean_v, new_var_v, new_count_s = pl.pallas_call(
        functools.partial(_stats_kernel, n_valid=float(n),
                          full_reduce=full_reduce),
        grid=(num_tiles,),
        in_specs=[x_spec, vec_spec, vec_spec, smem_spec],
        out_specs=(vec_spec, vec_spec, smem_spec),
        out_shape=(jax.ShapeDtypeStruct((1, width), jnp.float32),
                   jax.ShapeDtypeStruct((1, width), jnp.float32),
                   jax.ShapeDtypeStruct((1, 1), jnp.float32)),
        scratch_shapes=[pltpu.VMEM((1, width), jnp.float32),
                        pltpu.VMEM((1, width), jnp.float32)],
        compiler_params=pltpu.CompilerParams(
            dimension_semantics=("arbitrary",)),
    )(x2d, mean_v, var_v, count_s)

    # ---- Pass 2: normalize with the updated statistics ----
    out2d = pl.pallas_call(
        functools.partial(_normalize_kernel, epsilon=epsilon),
        grid=(num_tiles,),
        in_specs=[x_spec, vec_spec, vec_spec],
        out_specs=x_spec,
        out_shape=jax.ShapeDtypeStruct((rows_total, width), jnp.float32),
        input_output_aliases={0: 0} if fresh_input else {},
        compiler_params=pltpu.CompilerParams(
            dimension_semantics=("parallel",)),
    )(x2d, new_mean_v, new_var_v)

    if d == 1:
        out = out2d.reshape(rows_total * _LANES)[:n].reshape(n, 1)
    else:
        out = out2d[:n]

    new_mean = new_mean_v[0, :d]
    new_var = new_var_v[0, :d]
    new_count = new_count_s.reshape(1)
    return out, new_mean, new_var, new_count


def _reference(returns, mean, var, count, epsilon=1e-8):
    """Pure-JAX reference mirroring the PyTorch code (for verification)."""
    n = returns.shape[0]
    batch_mean = jnp.mean(returns, axis=0)
    batch_var = jnp.var(returns, axis=0, ddof=1)
    delta = batch_mean - mean
    tot = count + n
    new_mean = mean + delta * n / tot
    m2 = var * count + batch_var * n + jnp.square(delta) * count * n / tot
    new_var = m2 / tot
    out = jnp.clip((returns - new_mean) / jnp.sqrt(new_var + epsilon), -5.0, 5.0)
    return out, new_mean, new_var, tot


if __name__ == "__main__":
    key = jax.random.PRNGKey(0)
    k1, k2 = jax.random.split(key)

    # Case 1: default PPGA configuration, reward_dim = 1 (lane-dense path).
    batch, reward_dim = 8, 1
    returns = 3.0 * jax.random.normal(k1, (batch, reward_dim), jnp.float32) + 1.5
    mean0 = jnp.ones((reward_dim,), jnp.float32)   # buffers init to ones (RunningMeanStd)
    var0 = jnp.ones((reward_dim,), jnp.float32)
    count0 = jnp.ones((1,), jnp.float32)

    out, nm, nv, nc = return_normalizer_forward(returns, mean0, var0, count0)
    jax.block_until_ready((out, nm, nv, nc))
    r_out, r_m, r_v, r_c = _reference(returns, mean0, var0, count0)
    assert jnp.allclose(out, r_out, atol=1e-5, rtol=1e-5)
    assert jnp.allclose(nm, r_m, atol=1e-5, rtol=1e-5)
    assert jnp.allclose(nv, r_v, atol=1e-5, rtol=1e-5)
    assert jnp.allclose(nc, r_c, atol=1e-5, rtol=1e-5)

    # Case 2: generic reward_dim > 1 fallback path.
    batch_b, rd_b = 16, 3
    returns_b = 2.0 * jax.random.normal(k2, (batch_b, rd_b), jnp.float32) - 0.5
    mean_b = jnp.ones((rd_b,), jnp.float32)
    var_b = jnp.ones((rd_b,), jnp.float32)
    count_b = jnp.ones((1,), jnp.float32)

    out_b, nm_b, nv_b, nc_b = return_normalizer_forward(returns_b, mean_b, var_b, count_b)
    jax.block_until_ready((out_b, nm_b, nv_b, nc_b))
    rb = _reference(returns_b, mean_b, var_b, count_b)
    assert jnp.allclose(out_b, rb[0], atol=1e-5, rtol=1e-5)
    assert jnp.allclose(nm_b, rb[1], atol=1e-5, rtol=1e-5)
    assert jnp.allclose(nv_b, rb[2], atol=1e-5, rtol=1e-5)
    assert jnp.allclose(nc_b, rb[3], atol=1e-5, rtol=1e-5)

    print("KERNEL_OK")
</pallas_src>

<mosaic_0001>
module attributes {stable_mosaic.version = 11 : i64} {
  func.func @_normalize_kernel(%arg0: i32, %arg1: memref<8x128xf32, #tpu.memory_space<vmem>>, %arg2: memref<1x128xf32, #tpu.memory_space<vmem>>, %arg3: memref<1x128xf32, #tpu.memory_space<vmem>>, %arg4: memref<8x128xf32, #tpu.memory_space<vmem>>) attributes {dimension_semantics = [#tpu.dimension_semantics<parallel>], iteration_bounds = array<i64: 1>, scalar_prefetch = 0 : i64, scratch_operands = 0 : i64, tpu.core_type = #tpu.core_type<tc>, window_params = [{transform_indices = @transform_0, window_bounds = array<i64: 8, 128>}, {pipeline_mode = #tpu.pipeline_mode<synchronous>, transform_indices = @transform_1, window_bounds = array<i64: 1, 128>}, {pipeline_mode = #tpu.pipeline_mode<synchronous>, transform_indices = @transform_2, window_bounds = array<i64: 1, 128>}, {transform_indices = @transform_3, window_bounds = array<i64: 8, 128>}]} {
    %c0 = arith.constant 0 : index
    %c0_0 = arith.constant 0 : index
    %0 = vector.load %arg3[%c0, %c0_0] : memref<1x128xf32, #tpu.memory_space<vmem>>, vector<1x128xf32>
    %cst = arith.constant 9.99999993E-9 : f32
    %1 = vector.broadcast %cst : f32 to vector<1x128xf32>
    %2 = arith.addf %0, %1 : vector<1x128xf32>
    %3 = math.rsqrt %2 : vector<1x128xf32>
    %c0_1 = arith.constant 0 : index
    %c0_2 = arith.constant 0 : index
    %4 = vector.load %arg1[%c0_1, %c0_2] : memref<8x128xf32, #tpu.memory_space<vmem>>, vector<8x128xf32>
    %c0_3 = arith.constant 0 : index
    %c0_4 = arith.constant 0 : index
    %5 = vector.load %arg2[%c0_3, %c0_4] : memref<1x128xf32, #tpu.memory_space<vmem>>, vector<1x128xf32>
    %6 = vector.broadcast %5 : vector<1x128xf32> to vector<8x128xf32>
    %7 = arith.subf %4, %6 : vector<8x128xf32>
    %8 = vector.broadcast %3 : vector<1x128xf32> to vector<8x128xf32>
    %9 = arith.mulf %7, %8 : vector<8x128xf32>
    %cst_5 = arith.constant -5.000000e+00 : f32
    %cst_6 = arith.constant 5.000000e+00 : f32
    %10 = vector.broadcast %cst_5 : f32 to vector<8x128xf32>
    %11 = arith.maximumf %10, %9 : vector<8x128xf32>
    %12 = vector.broadcast %cst_6 : f32 to vector<8x128xf32>
    %13 = arith.minimumf %12, %11 : vector<8x128xf32>
    %c0_7 = arith.constant 0 : index
    %c0_8 = arith.constant 0 : index
    %14 = vector.load %arg4[%c0_7, %c0_8] : memref<8x128xf32, #tpu.memory_space<vmem>>, vector<8x128xf32>
    tpu.vector_store %arg4[%c0_7, %c0_8], %13 {strides = array<i32>} : memref<8x128xf32, #tpu.memory_space<vmem>>, vector<8x128xf32>,
    return
  }
  func.func @transform_0(%arg0: i32) -> (i32, i32) {
    %c0_i32 = arith.constant 0 : i32
    %c0_i32_0 = arith.constant 0 : i32
    return %arg0, %c0_i32 : i32, i32
  }
  func.func @transform_1(%arg0: i32) -> (i32, i32) {
    %c0_i32 = arith.constant 0 : i32
    %c0_i32_0 = arith.constant 0 : i32
    %c0_i32_1 = arith.constant 0 : i32
    return %c0_i32, %c0_i32_0 : i32, i32
  }
  func.func @transform_2(%arg0: i32) -> (i32, i32) {
    %c0_i32 = arith.constant 0 : i32
    %c0_i32_0 = arith.constant 0 : i32
    %c0_i32_1 = arith.constant 0 : i32
    return %c0_i32, %c0_i32_0 : i32, i32
  }
  func.func @transform_3(%arg0: i32) -> (i32, i32) {
    %c0_i32 = arith.constant 0 : i32
    %c0_i32_0 = arith.constant 0 : i32
    return %arg0, %c0_i32 : i32, i32
  }
}

module attributes {stable_mosaic.version = 11 : i64} {
  func.func @_stats_kernel(%arg0: i32, %arg1: memref<8x128xf32, #tpu.memory_space<vmem>>, %arg2: memref<1x128xf32, #tpu.memory_space<vmem>>, %arg3: memref<1x128xf32, #tpu.memory_space<vmem>>, %arg4: memref<1x1xf32, #tpu.memory_space<smem>>, %arg5: memref<1x128xf32, #tpu.memory_space<vmem>>, %arg6: memref<1x128xf32, #tpu.memory_space<vmem>>, %arg7: memref<1x1xf32, #tpu.memory_space<smem>>, %arg8: memref<1x128xf32, #tpu.memory_space<vmem>>, %arg9: memref<1x128xf32, #tpu.memory_space<vmem>>) attributes {dimension_semantics = [#tpu.dimension_semantics<arbitrary>], iteration_bounds = array<i64: 1>, scalar_prefetch = 0 : i64, scratch_operands = 2 : i64, tpu.core_type = #tpu.core_type<tc>, window_params = [{transform_indices = @transform_0, window_bounds = array<i64: 8, 128>}, {pipeline_mode = #tpu.pipeline_mode<synchronous>, transform_indices = @transform_1, window_bounds = array<i64: 1, 128>}, {pipeline_mode = #tpu.pipeline_mode<synchronous>, transform_indices = @transform_2, window_bounds = array<i64: 1, 128>}, {transform_indices = @transform_3, window_bounds = array<i64: 1, 1>}, {pipeline_mode = #tpu.pipeline_mode<synchronous>, transform_indices = @transform_4, window_bounds = array<i64: 1, 128>}, {pipeline_mode = #tpu.pipeline_mode<synchronous>, transform_indices = @transform_5, window_bounds = array<i64: 1, 128>}, {transform_indices = @transform_6, window_bounds = array<i64: 1, 1>}]} {
    %c0_i32 = arith.constant 0 : i32
    %0 = arith.cmpi eq, %arg0, %c0_i32 : i32
    %1 = arith.extui %0 : i1 to i32
    %c0_i32_0 = arith.constant 0 : i32
    %2 = arith.cmpi ne, %1, %c0_i32_0 : i32
    scf.if %2 {
      %cst_15 = arith.constant 0.000000e+00 : f32
      %21 = vector.broadcast %cst_15 : f32 to vector<1x128xf32>
      %c0_16 = arith.constant 0 : index
      %c0_17 = arith.constant 0 : index
      %22 = vector.load %arg8[%c0_16, %c0_17] : memref<1x128xf32, #tpu.memory_space<vmem>>, vector<1x128xf32>
      tpu.vector_store %arg8[%c0_16, %c0_17], %21 {strides = array<i32>} : memref<1x128xf32, #tpu.memory_space<vmem>>, vector<1x128xf32>,
      %cst_18 = arith.constant 0.000000e+00 : f32
      %23 = vector.broadcast %cst_18 : f32 to vector<1x128xf32>
      %c0_19 = arith.constant 0 : index
      %c0_20 = arith.constant 0 : index
      %24 = vector.load %arg9[%c0_19, %c0_20] : memref<1x128xf32, #tpu.memory_space<vmem>>, vector<1x128xf32>
      tpu.vector_store %arg9[%c0_19, %c0_20], %23 {strides = array<i32>} : memref<1x128xf32, #tpu.memory_space<vmem>>, vector<1x128xf32>,
    } else {
    }
    %c0 = arith.constant 0 : index
    %c0_1 = arith.constant 0 : index
    %3 = vector.load %arg1[%c0, %c0_1] : memref<8x128xf32, #tpu.memory_space<vmem>>, vector<8x128xf32>
    %c0_2 = arith.constant 0 : index
    %c0_3 = arith.constant 0 : index
    %4 = vector.load %arg2[%c0_2, %c0_3] : memref<1x128xf32, #tpu.memory_space<vmem>>, vector<1x128xf32>
    %5 = vector.broadcast %4 : vector<1x128xf32> to vector<8x128xf32>
    %6 = arith.subf %3, %5 : vector<8x128xf32>
    %c0_4 = arith.constant 0 : index
    %c0_5 = arith.constant 0 : index
    %7 = vector.load %arg8[%c0_4, %c0_5] : memref<1x128xf32, #tpu.memory_space<vmem>>, vector<1x128xf32>
    %cst = arith.constant dense<0.000000e+00> : vector<128xf32>
    %8 = vector.multi_reduction <add>, %6, %cst [0] : vector<8x128xf32> to vector<128xf32>
    %9 = vector.shape_cast %8 : vector<128xf32> to vector<1x128xf32>
    %10 = arith.addf %7, %9 : vector<1x128xf32>
    %c0_6 = arith.constant 0 : index
    %c0_7 = arith.constant 0 : index
    %11 = vector.load %arg8[%c0_6, %c0_7] : memref<1x128xf32, #tpu.memory_space<vmem>>, vector<1x128xf32>
    tpu.vector_store %arg8[%c0_6, %c0_7], %10 {strides = array<i32>} : memref<1x128xf32, #tpu.memory_space<vmem>>, vector<1x128xf32>,
    %c0_8 = arith.constant 0 : index
    %c0_9 = arith.constant 0 : index
    %12 = vector.load %arg9[%c0_8, %c0_9] : memref<1x128xf32, #tpu.memory_space<vmem>>, vector<1x128xf32>
    %13 = arith.mulf %6, %6 : vector<8x128xf32>
    %cst_10 = arith.constant dense<0.000000e+00> : vector<128xf32>
    %14 = vector.multi_reduction <add>, %13, %cst_10 [0] : vector<8x128xf32> to vector<128xf32>
    %15 = vector.shape_cast %14 : vector<128xf32> to vector<1x128xf32>
    %16 = arith.addf %12, %15 : vector<1x128xf32>
    %c0_11 = arith.constant 0 : index
    %c0_12 = arith.constant 0 : index
    %17 = vector.load %arg9[%c0_11, %c0_12] : memref<1x128xf32, #tpu.memory_space<vmem>>, vector<1x128xf32>
    tpu.vector_store %arg9[%c0_11, %c0_12], %16 {strides = array<i32>} : memref<1x128xf32, #tpu.memory_space<vmem>>, vector<1x128xf32>,
    %c0_i32_13 = arith.constant 0 : i32
    %18 = arith.cmpi eq, %arg0, %c0_i32_13 : i32
    %19 = arith.extui %18 : i1 to i32
    %c0_i32_14 = arith.constant 0 : i32
    %20 = arith.cmpi ne, %19, %c0_i32_14 : i32
    scf.if %20 {
      %c0_15 = arith.constant 0 : index
      %c0_16 = arith.constant 0 : index
      %21 = vector.load %arg8[%c0_15, %c0_16] : memref<1x128xf32, #tpu.memory_space<vmem>>, vector<1x128xf32>
      %c0_17 = arith.constant 0 : index
      %c0_18 = arith.constant 0 : index
      %22 = vector.load %arg9[%c0_17, %c0_18] : memref<1x128xf32, #tpu.memory_space<vmem>>, vector<1x128xf32>
      %23 = vector.shape_cast %21 : vector<1x128xf32> to vector<1x1x128xf32>
      %cst_19 = arith.constant dense<0.000000e+00> : vector<1xf32>
      %24 = vector.multi_reduction <add>, %23, %cst_19 [1, 2] : vector<1x1x128xf32> to vector<1xf32>
      %25 = vector.shape_cast %24 : vector<1xf32> to vector<1x1x1xf32>
      %26 = vector.extract %25[0, 0, 0] : f32 from vector<1x1x1xf32>
      %27 = vector.broadcast %26 : f32 to vector<1x128xf32>
      %28 = vector.shape_cast %22 : vector<1x128xf32> to vector<1x1x128xf32>
      %cst_20 = arith.constant dense<0.000000e+00> : vector<1xf32>
      %29 = vector.multi_reduction <add>, %28, %cst_20 [1, 2] : vector<1x1x128xf32> to vector<1xf32>
      %30 = vector.shape_cast %29 : vector<1xf32> to vector<1x1x1xf32>
      %31 = vector.extract %30[0, 0, 0] : f32 from vector<1x1x1xf32>
      %32 = vector.broadcast %31 : f32 to vector<1x128xf32>
      %c0_21 = arith.constant 0 : index
      %c0_22 = arith.constant 0 : index
      %33 = vector.load %arg2[%c0_21, %c0_22] : memref<1x128xf32, #tpu.memory_space<vmem>>, vector<1x128xf32>
      %c0_23 = arith.constant 0 : index
      %c0_24 = arith.constant 0 : index
      %34 = vector.load %arg3[%c0_23, %c0_24] : memref<1x128xf32, #tpu.memory_space<vmem>>, vector<1x128xf32>
      %c0_25 = arith.constant 0 : index
      %c0_26 = arith.constant 0 : index
      %35 = memref.load %arg4[%c0_25, %c0_26] : memref<1x1xf32, #tpu.memory_space<smem>>
      %cst_27 = arith.constant 8.000000e+00 : f32
      %36 = vector.broadcast %cst_27 : f32 to vector<1x128xf32>
      %37 = arith.divf %27, %36 : vector<1x128xf32>
      %38 = arith.addf %33, %37 : vector<1x128xf32>
      %39 = arith.mulf %27, %27 : vector<1x128xf32>
      %cst_28 = arith.constant 8.000000e+00 : f32
      %40 = vector.broadcast %cst_28 : f32 to vector<1x128xf32>
      %41 = arith.divf %39, %40 : vector<1x128xf32>
      %42 = arith.subf %32, %41 : vector<1x128xf32>
      %cst_29 = arith.constant 8.000000e+00 : f32
      %cst_30 = arith.constant 1.000000e+00 : f32
      %43 = arith.subf %cst_29, %cst_30 : f32
      %44 = vector.broadcast %43 : f32 to vector<1x128xf32>
      %45 = arith.divf %42, %44 : vector<1x128xf32>
      %46 = arith.subf %38, %33 : vector<1x128xf32>
      %cst_31 = arith.constant 8.000000e+00 : f32
      %47 = arith.addf %35, %cst_31 : f32
      %cst_32 = arith.constant 8.000000e+00 : f32
      %48 = arith.divf %cst_32, %47 : f32
      %49 = vector.broadcast %48 : f32 to vector<1x128xf32>
      %50 = arith.mulf %46, %49 : vector<1x128xf32>
      %51 = arith.addf %33, %50 : vector<1x128xf32>
      %c0_33 = arith.constant 0 : index
      %c0_34 = arith.constant 0 : index
      %52 = vector.load %arg5[%c0_33, %c0_34] : memref<1x128xf32, #tpu.memory_space<vmem>>, vector<1x128xf32>
      tpu.vector_store %arg5[%c0_33, %c0_34], %51 {strides = array<i32>} : memref<1x128xf32, #tpu.memory_space<vmem>>, vector<1x128xf32>,
      %53 = vector.broadcast %35 : f32 to vector<1x128xf32>
      %54 = arith.mulf %34, %53 : vector<1x128xf32>
      %cst_35 = arith.constant 8.000000e+00 : f32
      %55 = vector.broadcast %cst_35 : f32 to vector<1x128xf32>
      %56 = arith.mulf %45, %55 : vector<1x128xf32>
      %57 = arith.addf %54, %56 : vector<1x128xf32>
      %58 = arith.mulf %46, %46 : vector<1x128xf32>
      %cst_36 = arith.constant 8.000000e+00 : f32
      %59 = arith.mulf %35, %cst_36 : f32
      %60 = arith.divf %59, %47 : f32
      %61 = vector.broadcast %60 : f32 to vector<1x128xf32>
      %62 = arith.mulf %58, %61 : vector<1x128xf32>
      %63 = arith.addf %57, %62 : vector<1x128xf32>
      %64 = vector.broadcast %47 : f32 to vector<1x128xf32>
      %65 = arith.divf %63, %64 : vector<1x128xf32>
      %c0_37 = arith.constant 0 : index
      %c0_38 = arith.constant 0 : index
      %66 = vector.load %arg6[%c0_37, %c0_38] : memref<1x128xf32, #tpu.memory_space<vmem>>, vector<1x128xf32>
      tpu.vector_store %arg6[%c0_37, %c0_38], %65 {strides = array<i32>} : memref<1x128xf32, #tpu.memory_space<vmem>>, vector<1x128xf32>,
      %c0_39 = arith.constant 0 : index
      %c0_40 = arith.constant 0 : index
      %67 = memref.load %arg7[%c0_39, %c0_40] : memref<1x1xf32, #tpu.memory_space<smem>>
      memref.store %47, %arg7[%c0_39, %c0_40] : memref<1x1xf32, #tpu.memory_space<smem>>
    } else {
    }
    return
  }
  func.func @transform_0(%arg0: i32) -> (i32, i32) {
    %c0_i32 = arith.constant 0 : i32
    %c0_i32_0 = arith.constant 0 : i32
    return %arg0, %c0_i32 : i32, i32
  }
  func.func @transform_1(%arg0: i32) -> (i32, i32) {
    %c0_i32 = arith.constant 0 : i32
    %c0_i32_0 = arith.constant 0 : i32
    %c0_i32_1 = arith.constant 0 : i32
    return %c0_i32, %c0_i32_0 : i32, i32
  }
  func.func @transform_2(%arg0: i32) -> (i32, i32) {
    %c0_i32 = arith.constant 0 : i32
    %c0_i32_0 = arith.constant 0 : i32
    %c0_i32_1 = arith.constant 0 : i32
    return %c0_i32, %c0_i32_0 : i32, i32
  }
  func.func @transform_3(%arg0: i32) -> (i32, i32) {
    %c0_i32 = arith.constant 0 : i32
    %c0_i32_0 = arith.constant 0 : i32
    %c0_i32_1 = arith.constant 0 : i32
    return %c0_i32, %c0_i32_0 : i32, i32
  }
  func.func @transform_4(%arg0: i32) -> (i32, i32) {
    %c0_i32 = arith.constant 0 : i32
    %c0_i32_0 = arith.constant 0 : i32
    %c0_i32_1 = arith.constant 0 : i32
    return %c0_i32, %c0_i32_0 : i32, i32
  }
  func.func @transform_5(%arg0: i32) -> (i32, i32) {
    %c0_i32 = arith.constant 0 : i32
    %c0_i32_0 = arith.constant 0 : i32
    %c0_i32_1 = arith.constant 0 : i32
    return %c0_i32, %c0_i32_0 : i32, i32
  }
  func.func @transform_6(%arg0: i32) -> (i32, i32) {
    %c0_i32 = arith.constant 0 : i32
    %c0_i32_0 = arith.constant 0 : i32
    %c0_i32_1 = arith.constant 0 : i32
    return %c0_i32, %c0_i32_0 : i32, i32
  }
}

</mosaic_0001>

<llo_original>
// kernel: return_normalizer_forward.2
$region0: #{return_normalizer_forward.2}
  #allocation0 [shape = 'u32[]', space=smem, size = 0x4, offset = 0x4, fixed_abs, tag = 'smem constant byte address 0x4 - core index']
  #allocation1 [shape = 'u32[144,128]{1,0:T(1,128)}', space=vmem, size = 0x12000, scoped, tag = 'internal scratch']
  #allocation2 [shape = 'f32[1,128]{1,0:T(1,128)}', space=vmem, size = 0x200, scoped, tag = 'scratch operand']
  #allocation3 [shape = 'f32[1,128]{1,0:T(1,128)}', space=vmem, size = 0x200, scoped, tag = 'scratch operand']
  #allocation4 [shape = 'f32[1,1]{1,0:T(1,128)S(6)}', space=smem, size = 0x200, scoped, tag = 'scoped memory for return_normalizer_forward.2']
  %s0 = inlined_call_operand.vmem [shape: f32[8,128], index: 0, kind: input, shape index: {}]
  %s1 = inlined_call_operand.vmem [shape: f32[1,128], index: 1, kind: input, shape index: {}]
  %s2 = inlined_call_operand.vmem [shape: f32[1,128], index: 2, kind: input, shape index: {}]
  %s3 = inlined_call_operand.<no memory space> [shape: f32[1,1], index: 3, kind: input, shape index: {}]
  %s4 = inlined_call_operand.vmem [shape: f32[1,128], index: 4, kind: output, shape index: {0}]
  %s5 = inlined_call_operand.vmem [shape: f32[1,128], index: 5, kind: output, shape index: {1}]
  %s6 = inlined_call_operand.hbm [shape: f32[1,1], index: 6, kind: output, shape index: {2}]
  %7 = xla_tuple %s4, %s5, %s6
  %s8 = sld [smem:[#allocation0]]
  $region50: #{return_normalizer_forward.2} parent=0
    _
  %s10 = ssub.s32 1, %s8
  %s11 = scalar_select 0, %s10, %s8
  %12 = sst [smem:[#allocation4]] %s3
  $region1: #{return_normalizer_forward.2} parent=0
    #allocation5 [shape = 'u8[512]{0}', space=smem, size = 0x200, scoped, tag = 'output window, operand 2, single buffered']
    #allocation6 [shape = 's32[1]{0}', space=sflag, size = 0x4, scoped, tag = 'scoped memory for return_normalizer_forward.2']
    %13 = vsyncpa [#allocation6], 0
    // Predicated region
    $region2: #{return_normalizer_forward.2} parent=1 // pred_check
      _
    $region3: #{return_normalizer_forward.2} parent=1 // pred_check_branch
      %15 = sbr.rel (0) target = $region5
    $region4: #{return_normalizer_forward.2} parent=1 // pred_region
      _
    $region5: #{return_normalizer_forward.2} parent=1 // pred_fallthru
      _
    // Predicated region
    $region6: #{return_normalizer_forward.2} parent=1 // pred_check
      _
    $region7: #{return_normalizer_forward.2} parent=1 // pred_check_branch
      %17 = sbr.rel (0) target = $region9
    $region8: #{return_normalizer_forward.2} parent=1 // pred_region
      _
    $region9: #{return_normalizer_forward.2} parent=1 // pred_fallthru
      _
    // Predicated region
    $region10: #{return_normalizer_forward.2} parent=1 // pred_check
      _
    $region11: #{return_normalizer_forward.2} parent=1 // pred_check_branch
      %19 = sbr.rel (0) target = $region13
    $region12: #{return_normalizer_forward.2} parent=1 // pred_region
      _
    $region13: #{return_normalizer_forward.2} parent=1 // pred_fallthru
      _
    // Predicated region
    $region14: #{return_normalizer_forward.2} parent=1 // pred_check
      _
    $region15: #{return_normalizer_forward.2} parent=1 // pred_check_branch
      %21 = sbr.rel (0) target = $region17
    $region16: #{return_normalizer_forward.2} parent=1 // pred_region
      _
    $region17: #{return_normalizer_forward.2} parent=1 // pred_fallthru
      _
    %p22 = scmp.eq.s32.totalorder 0, 0
    // Predicated region
    $region18: #{return_normalizer_forward.2} parent=1 // pred_check
      %p23 = pneg %p22
    $region19: #{return_normalizer_forward.2} parent=1 // pred_check_branch
      %25 = sbr.rel (%p23) target = $region21
    $region20: #{return_normalizer_forward.2} parent=1 // pred_region
      %26 = vst [vmem:[#allocation2] sm:$0x1] 0.0
      %27 = vst [vmem:[#allocation3] sm:$0x1] 0.0
    $region21: #{return_normalizer_forward.2} parent=1 // pred_fallthru
      _
    %v28 = vld [vmem:[%s0] sm:$0xff]
    %v29 = vld [vmem:[%s1] sm:$0x1]
    %v31 = vlaneseq
    %v32 = vshrl.u32 %v31, 7
    %v33 = vsub.s32 0, %v32
    %v34 = vrot.slane %v29, %v33
    %v36 = vsub.f32 %v28, %v34
    %v37 = vld [vmem:[#allocation2] sm:$0x1]
    %v38 = vrot.slane %v36, 4
    %v39 = vadd.f32 %v36, %v38
    %v40 = vrot.slane %v39, 2
    %v41 = vadd.f32 %v39, %v40
    %v42 = vrot.slane %v41, 1
    %v43 = vadd.f32 %v41, %v42
    %v44 = vadd.f32 %v37, %v43
    %45 = vst [vmem:[#allocation2] sm:$0x1] %v44
    %v46 = vld [vmem:[#allocation3] sm:$0x1]
    %v47 = vmul.f32 %v36, %v36
    %v48 = vrot.slane %v47, 4
    %v49 = vadd.f32 %v47, %v48
    %v50 = vrot.slane %v49, 2
    %v51 = vadd.f32 %v49, %v50
    %v52 = vrot.slane %v51, 1
    %v53 = vadd.f32 %v51, %v52
    %v54 = vadd.f32 %v46, %v53
    %55 = vst [vmem:[#allocation3] sm:$0x1] %v54
    // Predicated region
    $region22: #{return_normalizer_forward.2} parent=1 // pred_check
      %p56 = pneg %p22
    $region23: #{return_normalizer_forward.2} parent=1 // pred_check_branch
      %58 = sbr.rel (%p56) target = $region25
    $region24: #{return_normalizer_forward.2} parent=1 // pred_region
      %v59 = vld [vmem:[#allocation2] sm:$0x1]
      %v60 = vld [vmem:[#allocation3] sm:$0x1]
      %vm61 = vcmask 1040384
      %v62 = vsel %vm61, %v59, 0.0
      %63 = vadd.xlane.f32.xlu0 %v62
      %v64 = vpop.xlane.xlu0 %63
      %v65 = vrot.slane %v64, 4
      %v66 = vadd.f32 %v64, %v65
      %v67 = vrot.slane %v66, 2
      %v68 = vadd.f32 %v66, %v67
      %v69 = vrot.slane %v68, 1
      %v70 = vadd.f32 %v68, %v69
      %s71 = vtos %v70
      %v72 = vstv %s71
      %v73 = vsel %vm61, %v60, 0.0
      %74 = vadd.xlane.f32.xlu0 %v73
      %v75 = vpop.xlane.xlu0 %74
      %v76 = vrot.slane %v75, 4
      %v77 = vadd.f32 %v75, %v76
      %v78 = vrot.slane %v77, 2
      %v79 = vadd.f32 %v77, %v78
      %v80 = vrot.slane %v79, 1
      %v81 = vadd.f32 %v79, %v80
      %s82 = vtos %v81
      %v83 = vstv %s82
      %v84 = vld [vmem:[%s1] sm:$0x1]
      %v85 = vld [vmem:[%s2] sm:$0x1]
      %s86 = sld [smem:[#allocation4]]
      %v87 = vrcp.pop 8.0
      %v88 = vmul.f32 %v72, %v87
      %v89 = vadd.f32 %v84, %v88
      %v90 = vmul.f32 %v72, %v72
      %v91 = vmul.f32 %v90, %v87
      %v92 = vsub.f32 %v83, %v91
      %v93 = vrcp.pop 7.0
      %v94 = vmul.f32 %v92, %v93
      %v95 = vsub.f32 %v89, %v84
      %s96 = sadd.f32 %s86, 8.0
      %v97 = vstv %s96
      %v98 = vrcp.pop %v97
      %s99 = vtos %v98
      %s100 = smul.f32 8.0, %s99
      %v101 = vstv %s100
      %v102 = vmul.f32 %v95, %v101
      %v103 = vadd.f32 %v84, %v102
      %104 = vst [vmem:[%s4] sm:$0x1] %v103
      %v105 = vstv %s86
      %v106 = vmul.f32 %v85, %v105
      %v107 = vmul.f32 %v94, 8.0
      %v108 = vadd.f32 %v106, %v107
      %v109 = vmul.f32 %v95, %v95
      %s110 = smul.f32 %s86, 8.0
      %v111 = vstv %s96
      %v112 = vrcp.pop %v111
      %s113 = vtos %v112
      %s114 = smul.f32 %s110, %s113
      %v115 = vstv %s114
      %v116 = vmul.f32 %v109, %v115
      %v117 = vadd.f32 %v108, %v116
      %v118 = vstv %s96
      %v119 = vrcp.pop %v118
      %v120 = vmul.f32 %v117, %v119
      %121 = vst [vmem:[%s5] sm:$0x1] %v120
      %s122 = scalar_lea.smem [#allocation5], 0
      %123 = sst [smem:[%s122]] %s96
    $region25: #{return_normalizer_forward.2} parent=1 // pred_fallthru
      _
    // Predicated region
    $region26: #{return_normalizer_forward.2} parent=1 // pred_check
      _
    $region27: #{return_normalizer_forward.2} parent=1 // pred_check_branch
      %125 = sbr.rel (0) target = $region29
    $region28: #{return_normalizer_forward.2} parent=1 // pred_region
      _
    $region29: #{return_normalizer_forward.2} parent=1 // pred_fallthru
      _
    // Predicated region
    $region30: #{return_normalizer_forward.2} parent=1 // pred_check
      _
    $region31: #{return_normalizer_forward.2} parent=1 // pred_check_branch
      %127 = sbr.rel (0) target = $region33
    $region32: #{return_normalizer_forward.2} parent=1 // pred_region
      _
    $region33: #{return_normalizer_forward.2} parent=1 // pred_fallthru
      _
    // Predicated region
    $region34: #{return_normalizer_forward.2} parent=1 // pred_check
      _
    $region35: #{return_normalizer_forward.2} parent=1 // pred_check_branch
      %129 = sbr.rel (0) target = $region37
    $region36: #{return_normalizer_forward.2} parent=1 // pred_region
      %s131 = ssub.s32 16, 16
      %132 = vsyncadd [#allocation6], %s131
      %135 = dma.smem_to_hbm [#allocation5], 16, %s6, [#allocation6]
    $region37: #{return_normalizer_forward.2} parent=1 // pred_fallthru
      _
    // Predicated region
    $region38: #{return_normalizer_forward.2} parent=1 // pred_check
      _
    $region39: #{return_normalizer_forward.2} parent=1 // pred_check_branch
      %137 = sbr.rel (0) target = $region41
    $region40: #{return_normalizer_forward.2} parent=1 // pred_region
      _
    $region41: #{return_normalizer_forward.2} parent=1 // pred_fallthru
      _
    // Predicated region
    $region42: #{return_normalizer_forward.2} parent=1 // pred_check
      _
    $region43: #{return_normalizer_forward.2} parent=1 // pred_check_branch
      %139 = sbr.rel (0) target = $region45
    $region44: #{return_normalizer_forward.2} parent=1 // pred_region
      _
    $region45: #{return_normalizer_forward.2} parent=1 // pred_fallthru
      _
    // Predicated region
    $region46: #{return_normalizer_forward.2} parent=1 // pred_check
      _
    $region47: #{return_normalizer_forward.2} parent=1 // pred_check_branch
      %141 = sbr.rel (0) target = $region49
    $region48: #{return_normalizer_forward.2} parent=1 // pred_region
      %142 = dma.done [#allocation6], 16
    $region49: #{return_normalizer_forward.2} parent=1 // pred_fallthru
      _
    %143 = sfence
    %144 = vsyncpa [#allocation6], 1

// kernel: return_normalizer_forward.3
$region0: #{return_normalizer_forward.3}
  #allocation0 [shape = 'u32[]', space=smem, size = 0x4, offset = 0x4, fixed_abs, tag = 'smem constant byte address 0x4 - core index']
  #allocation1 [shape = 'u32[144,128]{1,0:T(1,128)}', space=vmem, size = 0x12000, scoped, tag = 'internal scratch']
  %s0 = inlined_call_operand.vmem [shape: f32[8,128], index: 0, kind: input, shape index: {}, may-alias: {0,3}]
  %s1 = inlined_call_operand.vmem [shape: f32[1,128], index: 1, kind: input, shape index: {}]
  %s2 = inlined_call_operand.vmem [shape: f32[1,128], index: 2, kind: input, shape index: {}]
  %s3 = inlined_call_operand.vmem [shape: f32[8,128], index: 3, kind: output, shape index: {}, may-alias: {0,3}]
  %s4 = sld [smem:[#allocation0]]
  $region22: #{return_normalizer_forward.3} parent=0
    _
  %s6 = ssub.s32 1, %s4
  %s7 = scalar_select 0, %s6, %s4
  // Predicated region
  $region2: #{return_normalizer_forward.3} parent=0 // pred_check
    _
  $region3: #{return_normalizer_forward.3} parent=0 // pred_check_branch
    %9 = sbr.rel (0) target = $region5
  $region4: #{return_normalizer_forward.3} parent=0 // pred_region
    _
  $region5: #{return_normalizer_forward.3} parent=0 // pred_fallthru
    _
  // Predicated region
  $region6: #{return_normalizer_forward.3} parent=0 // pred_check
    _
  $region7: #{return_normalizer_forward.3} parent=0 // pred_check_branch
    %11 = sbr.rel (0) target = $region9
  $region8: #{return_normalizer_forward.3} parent=0 // pred_region
    _
  $region9: #{return_normalizer_forward.3} parent=0 // pred_fallthru
    _
  // Predicated region
  $region10: #{return_normalizer_forward.3} parent=0 // pred_check
    _
  $region11: #{return_normalizer_forward.3} parent=0 // pred_check_branch
    %13 = sbr.rel (0) target = $region13
  $region12: #{return_normalizer_forward.3} parent=0 // pred_region
    _
  $region13: #{return_normalizer_forward.3} parent=0 // pred_fallthru
    _
  %v14 = vld [vmem:[%s2] sm:$0x1]
  %v15 = vadd.f32 %v14, 1e-08
  %v16 = vrsqrt.pop %v15
  %v17 = vld [vmem:[%s0] sm:$0xff]
  %v18 = vld [vmem:[%s1] sm:$0x1]
  %v20 = vlaneseq
  %v21 = vshrl.u32 %v20, 7
  %v22 = vsub.s32 0, %v21
  %v23 = vrot.slane %v18, %v22
  %v25 = vsub.f32 %v17, %v23
  %v27 = vlaneseq
  %v28 = vshrl.u32 %v27, 7
  %v29 = vsub.s32 0, %v28
  %v30 = vrot.slane %v16, %v29
  %v32 = vmul.f32 %v25, %v30
  %v33 = vmax.f32 %v32, -5.0
  %v34 = vmin.f32 %v33, 5.0
  %35 = vst [vmem:[%s3] sm:$0xff] %v34
  // Predicated region
  $region14: #{return_normalizer_forward.3} parent=0 // pred_check
    _
  $region15: #{return_normalizer_forward.3} parent=0 // pred_check_branch
    %37 = sbr.rel (0) target = $region17
  $region16: #{return_normalizer_forward.3} parent=0 // pred_region
    _
  $region17: #{return_normalizer_forward.3} parent=0 // pred_fallthru
    _
  // Predicated region
  $region18: #{return_normalizer_forward.3} parent=0 // pred_check
    _
  $region19: #{return_normalizer_forward.3} parent=0 // pred_check_branch
    %39 = sbr.rel (0) target = $region21
  $region20: #{return_normalizer_forward.3} parent=0 // pred_region
    _
  $region21: #{return_normalizer_forward.3} parent=0 // pred_fallthru
    _

</llo_original>
